<compile_context>
chip_gen: v6e
topology: v6e:2x2x1
jax: 0.10.0
libtpu: 0.0.40
codegen_flags: <defaults>
</compile_context>

<pallas_src>
import functools

import jax
import jax.numpy as jnp
from jax.experimental import pallas as pl
from jax.experimental.pallas import tpu as pltpu


def _round_up(n, m):
    return ((n + m - 1) // m) * m


def mlp_kernel(xT_ref, w1_ref, b1_ref, w2_ref, b2_ref, w3_ref, b3_ref, oT_ref):
    # xT: (13, TB) bf16, batch on the lane axis. Weights in PyTorch (out, in) layout, bf16.
    xT = xT_ref[...]
    h1 = jnp.dot(w1_ref[...], xT, preferred_element_type=jnp.float32)          # (10, TB) f32
    h1 = jnp.maximum(h1 + b1_ref[...], 0.0)
    h2 = jnp.dot(w2_ref[...], h1.astype(jnp.bfloat16),
                 preferred_element_type=jnp.float32)                           # (10, TB) f32
    h2 = jnp.maximum(h2 + b2_ref[...], 0.0)
    out = jnp.dot(w3_ref[...], h2.astype(jnp.bfloat16),
                  preferred_element_type=jnp.float32)                          # (1, TB) f32
    oT_ref[...] = (out + b3_ref[...]).astype(oT_ref.dtype)


@functools.partial(jax.jit, static_argnames=("tb", "vmem_limit"))
def _mlp_forward_impl(x, w1, b1, w2, b2, w3, b3, *, tb, vmem_limit):
    B = x.shape[0]
    Bp = _round_up(B, tb)
    assert Bp % tb == 0

    # Cast to bf16 BEFORE the transpose (half-size materialized copy); pad to a
    # whole number of tiles. All of this fuses with the pallas_call inside one jit.
    xT = x.astype(jnp.bfloat16).T                         # (13, B) bf16, batch on lanes
    if Bp != B:
        xT = jnp.pad(xT, ((0, 0), (0, Bp - B)))

    def resident(shape):
        return pl.BlockSpec(shape, lambda i: (0, 0))

    outT = pl.pallas_call(
        mlp_kernel,
        out_shape=jax.ShapeDtypeStruct((1, Bp), jnp.float32),
        grid=(Bp // tb,),
        in_specs=[
            pl.BlockSpec((13, tb), lambda i: (0, i)),     # streamed bf16 batch tile
            resident((10, 13)), resident((10, 1)),        # W1 (bf16), b1 (f32)
            resident((10, 10)), resident((10, 1)),        # W2 (bf16), b2 (f32)
            resident((1, 10)), resident((1, 1)),          # W3 (bf16), b3 (f32)
        ],
        out_specs=pl.BlockSpec((1, tb), lambda i: (0, i)),  # lane-dense f32 output
        compiler_params=pltpu.CompilerParams(
            dimension_semantics=("parallel",),
            vmem_limit_bytes=vmem_limit,
        ),
    )(
        xT,
        w1.astype(jnp.bfloat16), b1.reshape(-1, 1).astype(jnp.float32),
        w2.astype(jnp.bfloat16), b2.reshape(-1, 1).astype(jnp.float32),
        w3.astype(jnp.bfloat16), b3.reshape(-1, 1).astype(jnp.float32),
    )
    return outT[:, :B].T                                  # back to (B, 1)


def mlp_forward(x, w1, b1, w2, b2, w3, b3, *, tb=65536):
    """x: (B, 13) f32. Weights/biases in PyTorch nn.Linear layout: w (out, in), b (out,)."""
    B = x.shape[0]
    # Lane-aligned batch tile (multiple of 128); shrink it for small B so we don't over-pad.
    tb = _round_up(min(tb, B), 128)

    # Scoped-VMEM estimate: double-buffered bf16 x tile (sublane-padded 13->16) +
    # double-buffered f32 out tile (padded 1->8), plus headroom for resident weights.
    est = 2 * (16 * tb * 2 + 8 * tb * 4) + (2 << 20)
    vmem_limit = int(min(max(est, 16 << 20), 48 << 20))   # stay under v7x's 64 MiB/TC

    return _mlp_forward_impl(x, w1, b1, w2, b2, w3, b3, tb=tb, vmem_limit=vmem_limit)


def init_params(key):
    """Deterministic init mimicking nn.Linear's uniform(-1/sqrt(fan_in), 1/sqrt(fan_in))."""
    ks = jax.random.split(key, 6)

    def linear(kw, kb, fan_in, fan_out):
        bound = 1.0 / jnp.sqrt(jnp.float32(fan_in))
        w = jax.random.uniform(kw, (fan_out, fan_in), jnp.float32, -bound, bound)
        b = jax.random.uniform(kb, (fan_out,), jnp.float32, -bound, bound)
        return w, b

    w1, b1 = linear(ks[0], ks[1], 13, 10)
    w2, b2 = linear(ks[2], ks[3], 10, 10)
    w3, b3 = linear(ks[4], ks[5], 10, 1)
    return w1, b1, w2, b2, w3, b3


def ref_forward(x, w1, b1, w2, b2, w3, b3):
    # Pure-JAX reference mirroring the kernel's numerics:
    # bf16 matmul operands everywhere, f32 accumulation, f32 bias-add / ReLU.
    h1 = jnp.dot(x.astype(jnp.bfloat16), w1.astype(jnp.bfloat16).T,
                 preferred_element_type=jnp.float32) + b1
    h1 = jnp.maximum(h1, 0.0)
    h2 = jnp.dot(h1.astype(jnp.bfloat16), w2.astype(jnp.bfloat16).T,
                 preferred_element_type=jnp.float32) + b2
    h2 = jnp.maximum(h2, 0.0)
    return jnp.dot(h2.astype(jnp.bfloat16), w3.astype(jnp.bfloat16).T,
                   preferred_element_type=jnp.float32) + b3


if __name__ == "__main__":
    key = jax.random.PRNGKey(0)
    k_x, k_p = jax.random.split(key)
    params = init_params(k_p)

    # Small demo batch (single grid step, batch padded 8 -> 128).
    B = 8
    x = jax.random.normal(k_x, (B, 13), jnp.float32)
    out = jax.block_until_ready(mlp_forward(x, *params))
    ref = ref_forward(x, *params)
    assert out.shape == (B, 1)
    assert jnp.allclose(out, ref, atol=1e-3, rtol=1e-3), "mismatch vs reference (B=8)"

    # Exercise a multi-step grid + partial-tile padding path (300 -> 384, 3 tiles of 128).
    B2 = 300
    x2 = jax.random.normal(k_x, (B2, 13), jnp.float32)
    out2 = jax.block_until_ready(mlp_forward(x2, *params, tb=128))
    ref2 = ref_forward(x2, *params)
    assert out2.shape == (B2, 1)
    assert jnp.allclose(out2, ref2, atol=1e-3, rtol=1e-3), "mismatch vs reference (B=300)"

    print("KERNEL_OK")
</pallas_src>

<mosaic_0001>
module attributes {stable_mosaic.version = 11 : i64} {
  func.func @mlp_kernel(%arg0: i32, %arg1: memref<13x128xbf16, #tpu.memory_space<vmem>>, %arg2: memref<10x13xbf16, #tpu.memory_space<vmem>>, %arg3: memref<10x1xf32, #tpu.memory_space<vmem>>, %arg4: memref<10x10xbf16, #tpu.memory_space<vmem>>, %arg5: memref<10x1xf32, #tpu.memory_space<vmem>>, %arg6: memref<1x10xbf16, #tpu.memory_space<vmem>>, %arg7: memref<1x1xf32, #tpu.memory_space<vmem>>, %arg8: memref<1x128xf32, #tpu.memory_space<vmem>>) attributes {dimension_semantics = [#tpu.dimension_semantics<parallel>], iteration_bounds = array<i64: 1>, scalar_prefetch = 0 : i64, scratch_operands = 0 : i64, tpu.core_type = #tpu.core_type<tc>, window_params = [{transform_indices = @transform_0, window_bounds = array<i64: 13, 128>}, {pipeline_mode = #tpu.pipeline_mode<synchronous>, transform_indices = @transform_1, window_bounds = array<i64: 10, 13>}, {pipeline_mode = #tpu.pipeline_mode<synchronous>, transform_indices = @transform_2, window_bounds = array<i64: 10, 1>}, {pipeline_mode = #tpu.pipeline_mode<synchronous>, transform_indices = @transform_3, window_bounds = array<i64: 10, 10>}, {pipeline_mode = #tpu.pipeline_mode<synchronous>, transform_indices = @transform_4, window_bounds = array<i64: 10, 1>}, {pipeline_mode = #tpu.pipeline_mode<synchronous>, transform_indices = @transform_5, window_bounds = array<i64: 1, 10>}, {pipeline_mode = #tpu.pipeline_mode<synchronous>, transform_indices = @transform_6, window_bounds = array<i64: 1, 1>}, {transform_indices = @transform_7, window_bounds = array<i64: 1, 128>}]} {
    %c0 = arith.constant 0 : index
    %c0_0 = arith.constant 0 : index
    %0 = vector.load %arg1[%c0, %c0_0] : memref<13x128xbf16, #tpu.memory_space<vmem>>, vector<13x128xbf16>
    %c0_1 = arith.constant 0 : index
    %c0_2 = arith.constant 0 : index
    %1 = vector.load %arg2[%c0_1, %c0_2] : memref<10x13xbf16, #tpu.memory_space<vmem>>, vector<10x13xbf16>
    %cst = arith.constant dense<0.000000e+00> : vector<10x128xf32>
    %2 = tpu.matmul %1, %0, %cst {dimension_numbers = #tpu.dot_dimension_numbers<[1], [0], [0], [1], [0, 0, 1, 1], [], []>} : vector<10x13xbf16>, vector<13x128xbf16>, vector<10x128xf32> -> vector<10x128xf32>
    %c0_3 = arith.constant 0 : index
    %c0_4 = arith.constant 0 : index
    %3 = vector.load %arg3[%c0_3, %c0_4] : memref<10x1xf32, #tpu.memory_space<vmem>>, vector<10x1xf32>
    %4 = vector.broadcast %3 : vector<10x1xf32> to vector<10x128xf32>
    %5 = arith.addf %2, %4 : vector<10x128xf32>
    %cst_5 = arith.constant 0.000000e+00 : f32
    %6 = vector.broadcast %cst_5 : f32 to vector<10x128xf32>
    %7 = arith.maximumf %5, %6 : vector<10x128xf32>
    %c0_6 = arith.constant 0 : index
    %c0_7 = arith.constant 0 : index
    %8 = vector.load %arg4[%c0_6, %c0_7] : memref<10x10xbf16, #tpu.memory_space<vmem>>, vector<10x10xbf16>
    %9 = arith.truncf %7 : vector<10x128xf32> to vector<10x128xbf16>
    %cst_8 = arith.constant dense<0.000000e+00> : vector<10x128xf32>
    %10 = tpu.matmul %8, %9, %cst_8 {dimension_numbers = #tpu.dot_dimension_numbers<[1], [0], [0], [1], [0, 0, 1, 1], [], []>} : vector<10x10xbf16>, vector<10x128xbf16>, vector<10x128xf32> -> vector<10x128xf32>
    %c0_9 = arith.constant 0 : index
    %c0_10 = arith.constant 0 : index
    %11 = vector.load %arg5[%c0_9, %c0_10] : memref<10x1xf32, #tpu.memory_space<vmem>>, vector<10x1xf32>
    %12 = vector.broadcast %11 : vector<10x1xf32> to vector<10x128xf32>
    %13 = arith.addf %10, %12 : vector<10x128xf32>
    %cst_11 = arith.constant 0.000000e+00 : f32
    %14 = vector.broadcast %cst_11 : f32 to vector<10x128xf32>
    %15 = arith.maximumf %13, %14 : vector<10x128xf32>
    %c0_12 = arith.constant 0 : index
    %c0_13 = arith.constant 0 : index
    %16 = vector.load %arg6[%c0_12, %c0_13] : memref<1x10xbf16, #tpu.memory_space<vmem>>, vector<1x10xbf16>
    %17 = arith.truncf %15 : vector<10x128xf32> to vector<10x128xbf16>
    %cst_14 = arith.constant dense<0.000000e+00> : vector<1x128xf32>
    %18 = tpu.matmul %16, %17, %cst_14 {dimension_numbers = #tpu.dot_dimension_numbers<[1], [0], [0], [1], [0, 0, 1, 1], [], []>} : vector<1x10xbf16>, vector<10x128xbf16>, vector<1x128xf32> -> vector<1x128xf32>
    %c0_15 = arith.constant 0 : index
    %c0_16 = arith.constant 0 : index
    %19 = vector.load %arg7[%c0_15, %c0_16] : memref<1x1xf32, #tpu.memory_space<vmem>>, vector<1x1xf32>
    %20 = vector.broadcast %19 : vector<1x1xf32> to vector<1x128xf32>
    %21 = arith.addf %18, %20 : vector<1x128xf32>
    %c0_17 = arith.constant 0 : index
    %c0_18 = arith.constant 0 : index
    %22 = vector.load %arg8[%c0_17, %c0_18] : memref<1x128xf32, #tpu.memory_space<vmem>>, vector<1x128xf32>
    tpu.vector_store %arg8[%c0_17, %c0_18], %21 {strides = array<i32>} : memref<1x128xf32, #tpu.memory_space<vmem>>, vector<1x128xf32>,
    return
  }
  func.func @transform_0(%arg0: i32) -> (i32, i32) {
    %c0_i32 = arith.constant 0 : i32
    %c0_i32_0 = arith.constant 0 : i32
    return %c0_i32, %arg0 : i32, i32
  }
  func.func @transform_1(%arg0: i32) -> (i32, i32) {
    %c0_i32 = arith.constant 0 : i32
    %c0_i32_0 = arith.constant 0 : i32
    %c0_i32_1 = arith.constant 0 : i32
    return %c0_i32, %c0_i32_0 : i32, i32
  }
  func.func @transform_2(%arg0: i32) -> (i32, i32) {
    %c0_i32 = arith.constant 0 : i32
    %c0_i32_0 = arith.constant 0 : i32
    %c0_i32_1 = arith.constant 0 : i32
    return %c0_i32, %c0_i32_0 : i32, i32
  }
  func.func @transform_3(%arg0: i32) -> (i32, i32) {
    %c0_i32 = arith.constant 0 : i32
    %c0_i32_0 = arith.constant 0 : i32
    %c0_i32_1 = arith.constant 0 : i32
    return %c0_i32, %c0_i32_0 : i32, i32
  }
  func.func @transform_4(%arg0: i32) -> (i32, i32) {
    %c0_i32 = arith.constant 0 : i32
    %c0_i32_0 = arith.constant 0 : i32
    %c0_i32_1 = arith.constant 0 : i32
    return %c0_i32, %c0_i32_0 : i32, i32
  }
  func.func @transform_5(%arg0: i32) -> (i32, i32) {
    %c0_i32 = arith.constant 0 : i32
    %c0_i32_0 = arith.constant 0 : i32
    %c0_i32_1 = arith.constant 0 : i32
    return %c0_i32, %c0_i32_0 : i32, i32
  }
  func.func @transform_6(%arg0: i32) -> (i32, i32) {
    %c0_i32 = arith.constant 0 : i32
    %c0_i32_0 = arith.constant 0 : i32
    %c0_i32_1 = arith.constant 0 : i32
    return %c0_i32, %c0_i32_0 : i32, i32
  }
  func.func @transform_7(%arg0: i32) -> (i32, i32) {
    %c0_i32 = arith.constant 0 : i32
    %c0_i32_0 = arith.constant 0 : i32
    return %c0_i32, %arg0 : i32, i32
  }
}

</mosaic_0001>

<llo_original>
// kernel: _mlp_forward_impl.1
$region0: #{_mlp_forward_impl.1}
  #allocation0 [shape = 'u32[]', space=smem, size = 0x4, offset = 0x4, fixed_abs, tag = 'smem constant byte address 0x4 - core index']
  #allocation1 [shape = 'u32[144,128]{1,0:T(1,128)}', space=vmem, size = 0x12000, scoped, tag = 'internal scratch']
  #allocation2 [shape = 'f32[1,1]{1,0:T(1,128)S(1)}', space=vmem, size = 0x200, scoped, tag = 'scoped memory for _mlp_forward_impl.1']
  %s0 = inlined_call_operand.vmem [shape: bf16[13,128], index: 0, kind: input, shape index: {}]
  %s1 = inlined_call_operand.vmem [shape: bf16[10,13], index: 1, kind: input, shape index: {}]
  %s2 = inlined_call_operand.vmem [shape: f32[10,1], index: 2, kind: input, shape index: {}]
  %s3 = inlined_call_operand.vmem [shape: bf16[10,10], index: 3, kind: input, shape index: {}]
  %s4 = inlined_call_operand.vmem [shape: f32[10,1], index: 4, kind: input, shape index: {}]
  %s5 = inlined_call_operand.vmem [shape: bf16[1,10], index: 5, kind: input, shape index: {}]
  %s6 = inlined_call_operand.<no memory space> [shape: f32[1,1], index: 6, kind: input, shape index: {}]
  %s7 = inlined_call_operand.vmem [shape: f32[1,128], index: 7, kind: output, shape index: {}]
  %s8 = sld [smem:[#allocation0]]
  $region38: #{_mlp_forward_impl.1} parent=0
    _
  %s10 = ssub.s32 1, %s8
  %s11 = scalar_select 0, %s10, %s8
  %v12 = vstv %s6
  %13 = vst [vmem:[#allocation2] sm:$0x1] %v12
  // Predicated region
  $region2: #{_mlp_forward_impl.1} parent=0 // pred_check
    _
  $region3: #{_mlp_forward_impl.1} parent=0 // pred_check_branch
    %15 = sbr.rel (0) target = $region5
  $region4: #{_mlp_forward_impl.1} parent=0 // pred_region
    _
  $region5: #{_mlp_forward_impl.1} parent=0 // pred_fallthru
    _
  // Predicated region
  $region6: #{_mlp_forward_impl.1} parent=0 // pred_check
    _
  $region7: #{_mlp_forward_impl.1} parent=0 // pred_check_branch
    %17 = sbr.rel (0) target = $region9
  $region8: #{_mlp_forward_impl.1} parent=0 // pred_region
    _
  $region9: #{_mlp_forward_impl.1} parent=0 // pred_fallthru
    _
  // Predicated region
  $region10: #{_mlp_forward_impl.1} parent=0 // pred_check
    _
  $region11: #{_mlp_forward_impl.1} parent=0 // pred_check_branch
    %19 = sbr.rel (0) target = $region13
  $region12: #{_mlp_forward_impl.1} parent=0 // pred_region
    _
  $region13: #{_mlp_forward_impl.1} parent=0 // pred_fallthru
    _
  // Predicated region
  $region14: #{_mlp_forward_impl.1} parent=0 // pred_check
    _
  $region15: #{_mlp_forward_impl.1} parent=0 // pred_check_branch
    %21 = sbr.rel (0) target = $region17
  $region16: #{_mlp_forward_impl.1} parent=0 // pred_region
    _
  $region17: #{_mlp_forward_impl.1} parent=0 // pred_fallthru
    _
  // Predicated region
  $region18: #{_mlp_forward_impl.1} parent=0 // pred_check
    _
  $region19: #{_mlp_forward_impl.1} parent=0 // pred_check_branch
    %23 = sbr.rel (0) target = $region21
  $region20: #{_mlp_forward_impl.1} parent=0 // pred_region
    _
  $region21: #{_mlp_forward_impl.1} parent=0 // pred_fallthru
    _
  // Predicated region
  $region22: #{_mlp_forward_impl.1} parent=0 // pred_check
    _
  $region23: #{_mlp_forward_impl.1} parent=0 // pred_check_branch
    %25 = sbr.rel (0) target = $region25
  $region24: #{_mlp_forward_impl.1} parent=0 // pred_region
    _
  $region25: #{_mlp_forward_impl.1} parent=0 // pred_fallthru
    _
  // Predicated region
  $region26: #{_mlp_forward_impl.1} parent=0 // pred_check
    _
  $region27: #{_mlp_forward_impl.1} parent=0 // pred_check_branch
    %27 = sbr.rel (0) target = $region29
  $region28: #{_mlp_forward_impl.1} parent=0 // pred_region
    _
  $region29: #{_mlp_forward_impl.1} parent=0 // pred_fallthru
    _
  %v29 = vld [vmem:[%s0] sm:$0xf]
  %v30 = vld [vmem:[%s0 + $0x4] sm:$0x7]
  %v31 = vld [vmem:[%s1] sm:$0xf]
  %v32 = vld [vmem:[%s1 + $0x4] sm:$0x1]
  %v33 = vld [vmem:[%s2] sm:$0xff]
  %v34 = vld [vmem:[%s2 + $0x8] sm:$0x3]
  %36 = vset.pattern.permute.xlu0 0
  %37 = vperm.xlu0 %36, %v33
  %v38 = vpop.permute.xlu0 %37
  %41 = vset.pattern.permute.xlu0 0
  %42 = vperm.xlu0 %41, %v34
  %v43 = vpop.permute.xlu0 %42
  %v47 = vunpack.c.l.b16 %v31
  %v48 = vunpack.c.l.b16 %v32
  %v49 = vpack.c.b16 %v48, %v47
  %v52 = vunpack.c.l.b16 %v29
  %v53 = vunpack.c.l.b16 %v30
  %v54 = vpack.c.b16 %v53, %v52
  %vm55 = vcmask 105472
  %v57 = vsel %vm55, %v49, 0
  %vm59 = vcmask 1045504
  %vm60 = vcmask 1046528
  %v61 = vsel %vm59, 4294967295, 65535
  %v62 = vsel %vm60, %v61, 0
  %v64 = vand.u32 %v54, %v62
  %66 = vmatprep.subr.bf16.mxu0 0
  %67 = vmatpush1.bf16.msra.mxu0 0
  %68 = vmatprep.subr.bf16.mxu0 0
  %69 = vmatpush1.bf16.msra.mxu0 0
  %70 = vmatprep.subr.bf16.mxu0 0
  %71 = vmatpush1.bf16.msra.mxu0 0
  %72 = vmatprep.subr.bf16.mxu0 0
  %73 = vmatpush1.bf16.msra.mxu0 0
  %74 = vmatprep.subr.bf16.mxu0 0
  %75 = vmatpush1.bf16.msra.mxu0 0
  %76 = vmatprep.subr.bf16.mxu0 0
  %77 = vmatpush1.bf16.msra.mxu0 0
  %78 = vmatprep.subr.bf16.mxu0 0
  %79 = vmatpush1.bf16.msra.mxu0 0
  %80 = vmatprep.subr.bf16.mxu0 0
  %81 = vmatpush1.bf16.msra.mxu0 %v64
  %82 = vmatprep.subr.bf16.mxu0 0
  %83 = vmatpush2.bf16.msra.mxu0 0
  %84 = vmatprep.subr.bf16.mxu0 0
  %85 = vmatpush2.bf16.msra.mxu0 0
  %86 = vmatprep.subr.bf16.mxu0 0
  %87 = vmatpush2.bf16.msra.mxu0 0
  %88 = vmatprep.subr.bf16.mxu0 0
  %89 = vmatpush2.bf16.msra.mxu0 0
  %90 = vmatprep.subr.bf16.mxu0 0
  %91 = vmatpush2.bf16.msra.mxu0 0
  %92 = vmatprep.subr.bf16.mxu0 0
  %93 = vmatpush2.bf16.msra.mxu0 0
  %94 = vmatprep.subr.bf16.mxu0 0
  %95 = vmatpush2.bf16.msra.mxu0 0
  %96 = vmatprep.subr.bf16.mxu0 0
  %97 = vmatpush2.bf16.msra.mxu0 0
  %98 = vmatprep.mubr.bf16.mxu0 0
  %99 = vmatmul.mubr.bf16.gmra.mxu0 %v57
  %v100 = vpop.f32.mrf.mxu0
  %v101 = vadd.f32 %v38, %v100
  %v102 = vpop.f32.mrf.mxu0
  %v103 = vpop.f32.mrf.mxu0
  %v104 = vadd.f32 %v43, %v103
  %v105 = vpop.f32.mrf.mxu0
  %106 = vdwg.mxu0
  %v107 = vmax.f32 %v101, 0.0
  %v108 = vmax.f32 %v104, 0.0
  %v109 = vld [vmem:[%s3] sm:$0xf]
  %v110 = vld [vmem:[%s3 + $0x4] sm:$0x1]
  %v111 = vpack.c.bf16 %v108, %v107
  %v112 = vld [vmem:[%s4] sm:$0xff]
  %v113 = vld [vmem:[%s4 + $0x8] sm:$0x3]
  %115 = vset.pattern.permute.xlu0 0
  %116 = vperm.xlu0 %115, %v112
  %v117 = vpop.permute.xlu0 %116
  %120 = vset.pattern.permute.xlu0 0
  %121 = vperm.xlu0 %120, %v113
  %v122 = vpop.permute.xlu0 %121
  %v126 = vunpack.c.l.b16 %v109
  %v127 = vunpack.c.l.b16 %v110
  %v128 = vpack.c.b16 %v127, %v126
  %vm129 = vcmask 80896
  %v131 = vsel %vm129, %v128, 0
  %vm133 = vcmask 1044480
  %v135 = vsel %vm133, %v111, 0
  %137 = vmatprep.subr.bf16.mxu0 0
  %138 = vmatpush1.bf16.msra.mxu0 0
  %139 = vmatprep.subr.bf16.mxu0 0
  %140 = vmatpush1.bf16.msra.mxu0 0
  %141 = vmatprep.subr.bf16.mxu0 0
  %142 = vmatpush1.bf16.msra.mxu0 0
  %143 = vmatprep.subr.bf16.mxu0 0
  %144 = vmatpush1.bf16.msra.mxu0 0
  %145 = vmatprep.subr.bf16.mxu0 0
  %146 = vmatpush1.bf16.msra.mxu0 0
  %147 = vmatprep.subr.bf16.mxu0 0
  %148 = vmatpush1.bf16.msra.mxu0 0
  %149 = vmatprep.subr.bf16.mxu0 0
  %150 = vmatpush1.bf16.msra.mxu0 0
  %151 = vmatprep.subr.bf16.mxu0 0
  %152 = vmatpush1.bf16.msra.mxu0 %v135
  %153 = vmatprep.subr.bf16.mxu0 0
  %154 = vmatpush2.bf16.msra.mxu0 0
  %155 = vmatprep.subr.bf16.mxu0 0
  %156 = vmatpush2.bf16.msra.mxu0 0
  %157 = vmatprep.subr.bf16.mxu0 0
  %158 = vmatpush2.bf16.msra.mxu0 0
  %159 = vmatprep.subr.bf16.mxu0 0
  %160 = vmatpush2.bf16.msra.mxu0 0
  %161 = vmatprep.subr.bf16.mxu0 0
  %162 = vmatpush2.bf16.msra.mxu0 0
  %163 = vmatprep.subr.bf16.mxu0 0
  %164 = vmatpush2.bf16.msra.mxu0 0
  %165 = vmatprep.subr.bf16.mxu0 0
  %166 = vmatpush2.bf16.msra.mxu0 0
  %167 = vmatprep.subr.bf16.mxu0 0
  %168 = vmatpush2.bf16.msra.mxu0 0
  %169 = vmatprep.mubr.bf16.mxu0 0
  %170 = vmatmul.mubr.bf16.gmra.mxu0 %v131
  %v171 = vpop.f32.mrf.mxu0
  %v172 = vadd.f32 %v117, %v171
  %v173 = vpop.f32.mrf.mxu0
  %v174 = vpop.f32.mrf.mxu0
  %v175 = vadd.f32 %v122, %v174
  %v176 = vpop.f32.mrf.mxu0
  %177 = vdwg.mxu0
  %v178 = vmax.f32 %v172, 0.0
  %v179 = vmax.f32 %v175, 0.0
  %v180 = vld [vmem:[%s5] sm:$0x1]
  %v181 = vpack.c.bf16 %v179, %v178
  %v182 = vld [vmem:[#allocation2] sm:$0x1]
  %184 = vset.pattern.permute.xlu0 0
  %185 = vperm.xlu0 %184, %v182
  %v186 = vpop.permute.xlu0 %185
  %v188 = vlaneseq
  %v189 = vshrl.u32 %v188, 7
  %v190 = vsub.s32 0, %v189
  %v191 = vrot.slane %v186, %v190
  %v193 = vsel %vm129, %v180, 0
  %v196 = vsel %vm133, %v181, 0
  %198 = vmatprep.subr.bf16.mxu0 0
  %199 = vmatpush1.bf16.msra.mxu0 0
  %200 = vmatprep.subr.bf16.mxu0 0
  %201 = vmatpush1.bf16.msra.mxu0 0
  %202 = vmatprep.subr.bf16.mxu0 0
  %203 = vmatpush1.bf16.msra.mxu0 0
  %204 = vmatprep.subr.bf16.mxu0 0
  %205 = vmatpush1.bf16.msra.mxu0 0
  %206 = vmatprep.subr.bf16.mxu0 0
  %207 = vmatpush1.bf16.msra.mxu0 0
  %208 = vmatprep.subr.bf16.mxu0 0
  %209 = vmatpush1.bf16.msra.mxu0 0
  %210 = vmatprep.subr.bf16.mxu0 0
  %211 = vmatpush1.bf16.msra.mxu0 0
  %212 = vmatprep.subr.bf16.mxu0 0
  %213 = vmatpush1.bf16.msra.mxu0 %v196
  %214 = vmatprep.subr.bf16.mxu0 0
  %215 = vmatpush2.bf16.msra.mxu0 0
  %216 = vmatprep.subr.bf16.mxu0 0
  %217 = vmatpush2.bf16.msra.mxu0 0
  %218 = vmatprep.subr.bf16.mxu0 0
  %219 = vmatpush2.bf16.msra.mxu0 0
  %220 = vmatprep.subr.bf16.mxu0 0
  %221 = vmatpush2.bf16.msra.mxu0 0
  %222 = vmatprep.subr.bf16.mxu0 0
  %223 = vmatpush2.bf16.msra.mxu0 0
  %224 = vmatprep.subr.bf16.mxu0 0
  %225 = vmatpush2.bf16.msra.mxu0 0
  %226 = vmatprep.subr.bf16.mxu0 0
  %227 = vmatpush2.bf16.msra.mxu0 0
  %228 = vmatprep.subr.bf16.mxu0 0
  %229 = vmatpush2.bf16.msra.mxu0 0
  %230 = vmatprep.mubr.bf16.mxu0 0
  %231 = vmatmul.mubr.bf16.gmra.mxu0 %v193
  %v232 = vpop.f32.mrf.mxu0
  %v233 = vadd.f32 %v191, %v232
  %v234 = vpop.f32.mrf.mxu0
  %v235 = vpop.f32.mrf.mxu0
  %v236 = vpop.f32.mrf.mxu0
  %237 = vdwg.mxu0
  %238 = vst [vmem:[%s7] sm:$0x1] %v233
  // Predicated region
  $region30: #{_mlp_forward_impl.1} parent=0 // pred_check
    _
  $region31: #{_mlp_forward_impl.1} parent=0 // pred_check_branch
    %240 = sbr.rel (0) target = $region33
  $region32: #{_mlp_forward_impl.1} parent=0 // pred_region
    _
  $region33: #{_mlp_forward_impl.1} parent=0 // pred_fallthru
    _
  // Predicated region
  $region34: #{_mlp_forward_impl.1} parent=0 // pred_check
    _
  $region35: #{_mlp_forward_impl.1} parent=0 // pred_check_branch
    %242 = sbr.rel (0) target = $region37
  $region36: #{_mlp_forward_impl.1} parent=0 // pred_region
    _
  $region37: #{_mlp_forward_impl.1} parent=0 // pred_fallthru
    _

</llo_original>
